<compile_context>
chip_gen: v7x
topology: tpu7x:2x2x1
jax: 0.10.0
libtpu: 0.0.40
codegen_flags: <defaults>
</compile_context>

<pallas_src>
import math

import jax
import jax.numpy as jnp
from jax.experimental import pallas as pl
from jax.experimental.pallas import tpu as pltpu


# ----------------------------------------------------------------------------
# Pallas kernel: fused encoder (Linear + ReLU, both branches folded into N)
# followed by the Matryoshka projector as a single bf16 matmul against the
# masked, block-diagonal weight stack.
# ----------------------------------------------------------------------------
def _relic_kernel(x_ref, w_enc_ref, b_enc_ref, w_proj_ref, o_ref):
    # Encoder: feat = relu(x @ [W_on | W_tg] + [b_on | b_tg]);
    # bf16 operands, f32 accumulate on the MXU.
    feat = jnp.dot(x_ref[...], w_enc_ref[...],
                   preferred_element_type=jnp.float32)
    feat = jnp.maximum(feat + b_enc_ref[...], 0.0)

    # Matryoshka projector: one bf16 matmul against the masked weight stack
    # (rows >= nd_j zeroed per column block), so
    #   slab[:, j*out:(j+1)*out] == feat[:, :nd_j] @ W_proj[:nd_j, :]
    # for each branch.  Output slab is lane-dense (width multiple of 128).
    o_ref[...] = jnp.dot(feat.astype(jnp.bfloat16), w_proj_ref[...],
                         preferred_element_type=jnp.float32)


# ----------------------------------------------------------------------------
# Fused forward: one pallas_call covering {online, target} x {x1, x2}.
# ----------------------------------------------------------------------------
def relic_forward(params, x1, x2, nesting_dims, proj_out_dim):
    nesting_dims = tuple(int(n) for n in nesting_dims)
    assert all(a < b for a, b in zip(nesting_dims, nesting_dims[1:])), \
        "nesting_dims must be strictly increasing"
    n_nd = len(nesting_dims)
    b = x1.shape[0]
    m = 2 * b

    # Flatten + cast activations once; x1 rows [0:b], x2 rows [b:2b].
    x = jnp.concatenate(
        [x1.reshape(b, -1), x2.reshape(b, -1)], axis=0).astype(jnp.bfloat16)
    in_dim = x.shape[1]

    # Pre-stacked / pre-cast weights (built once at init, not per call).
    stk = params["stacked"]
    w_enc = stk["w_enc_both"]        # (in_dim, 2*d_feat)        bf16
    b_enc = stk["b_enc_both"]        # (1, 2*d_feat)             f32
    w_proj = stk["w_proj_stack"]     # (2*d_feat, slab2_pad)     bf16
    d2 = w_enc.shape[1]
    slab2_pad = w_proj.shape[1]
    slab_w = n_nd * proj_out_dim

    # M tiling: 256-row tiles at realistic batch sizes ("parallel" -> the two
    # v7x TensorCores split the tiles); a single full-array block at toy sizes.
    tm = 256 if m >= 256 else m
    m_pad = pl.cdiv(m, tm) * tm
    if m_pad != m:
        x = jnp.pad(x, ((0, m_pad - m), (0, 0)))

    flops = 2 * m_pad * in_dim * d2 + 2 * m_pad * d2 * slab2_pad
    bytes_accessed = (x.size * 2 + w_enc.size * 2 + b_enc.size * 4
                      + w_proj.size * 2 + m_pad * slab2_pad * 4)

    slab = pl.pallas_call(
        _relic_kernel,
        grid=(m_pad // tm,),
        in_specs=[
            # Per-tile activation block.
            pl.BlockSpec((tm, in_dim), lambda i: (i, 0)),
            # Constant-index weight blocks: DMA'd once, stay VMEM resident.
            # TODO(synk): for a realistic encoder (large in_dim) on v7x's
            # 64 MiB VMEM, add an innermost "arbitrary" K grid axis with
            # (tm, tk)/(tk, d2) blocks + an f32 VMEM accumulator, set
            # vmem_limit_bytes explicitly, and single-buffer these specs.
            pl.BlockSpec((in_dim, d2), lambda i: (0, 0)),
            pl.BlockSpec((1, d2), lambda i: (0, 0)),
            pl.BlockSpec((d2, slab2_pad), lambda i: (0, 0)),
        ],
        out_specs=pl.BlockSpec((tm, slab2_pad), lambda i: (i, 0)),
        out_shape=jax.ShapeDtypeStruct((m_pad, slab2_pad), jnp.float32),
        compiler_params=pltpu.CompilerParams(
            dimension_semantics=("parallel",)),
        cost_estimate=pl.CostEstimate(flops=flops, transcendentals=0,
                                      bytes_accessed=bytes_accessed),
    )(x, w_enc, b_enc, w_proj)

    # Column layout: [0:slab_w] online, [slab_w:2*slab_w] target,
    # each split into n_nd blocks of width proj_out_dim (then lane padding).
    def split(col0, rows):
        return [slab[rows, col0 + j * proj_out_dim:col0 + (j + 1) * proj_out_dim]
                for j in range(n_nd)]

    o1 = split(0, slice(0, b))
    o2 = split(0, slice(b, m))
    # Target branch is no-grad (detach).
    # TODO(synk): forward-only; training through this pallas_call needs a
    # custom_vjp (its own backward kernel), so stop_gradient is advisory here.
    t1 = [jax.lax.stop_gradient(t) for t in split(slab_w, slice(0, b))]
    t2 = [jax.lax.stop_gradient(t) for t in split(slab_w, slice(b, m))]
    return o1, o2, t1, t2


# ----------------------------------------------------------------------------
# Deterministic parameter construction (mimics torch.nn.Linear default init)
# plus one-time pre-stacking of the kernel-side weights.
# ----------------------------------------------------------------------------
def _linear_init(key, fan_in, fan_out, bias):
    k = 1.0 / math.sqrt(fan_in)
    kw, kb = jax.random.split(key)
    w = jax.random.uniform(kw, (fan_out, fan_in), jnp.float32, -k, k)
    b = jax.random.uniform(kb, (fan_out,), jnp.float32, -k, k) if bias else None
    return w, b


def _precompute_stacked(online, target, nesting_dims, proj_out_dim):
    """Fold online/target into N and build the masked Matryoshka weight stack.

    Done once at init; in training it would be re-run after each EMA update
    of the target parameters (update_params / copy_params).
    """
    d_feat = online["w_enc"].shape[1]
    n_nd = len(nesting_dims)
    slab_w = n_nd * proj_out_dim

    w_enc_both = jnp.concatenate([online["w_enc"], target["w_enc"]],
                                 axis=1).astype(jnp.bfloat16)
    b_enc_both = jnp.concatenate([online["b_enc"], target["b_enc"]], axis=1)

    row = jnp.arange(d_feat)[:, None]

    def stack_one(w_proj):
        # j-th out_dim-wide column block = w_proj with rows >= nesting_dims[j]
        # zeroed, so feat @ block == feat[:, :nd_j] @ w_proj[:nd_j, :].
        return jnp.concatenate(
            [jnp.where(row < nd, w_proj, 0.0) for nd in nesting_dims], axis=1)

    zeros = jnp.zeros((d_feat, slab_w), jnp.float32)
    w_proj_stack = jnp.concatenate(
        [jnp.concatenate([stack_one(online["w_proj"]), zeros], axis=1),
         jnp.concatenate([zeros, stack_one(target["w_proj"])], axis=1)],
        axis=0)                                         # (2*d_feat, 2*slab_w)

    # Pad the output width up to a multiple of 128 -> lane-dense stores.
    slab2 = 2 * slab_w
    slab2_pad = ((slab2 + 127) // 128) * 128
    if slab2_pad != slab2:
        w_proj_stack = jnp.pad(w_proj_stack, ((0, 0), (0, slab2_pad - slab2)))

    return {"w_enc_both": w_enc_both,
            "b_enc_both": b_enc_both,
            "w_proj_stack": w_proj_stack.astype(jnp.bfloat16)}


def init_relic_params(key, in_dim, proj_in_dim, proj_out_dim, nesting_dims):
    ke, kh, kp = jax.random.split(key, 3)
    w_enc, b_enc = _linear_init(ke, in_dim, proj_in_dim, bias=True)
    # matryoshka_bias=False -> projector linears have no bias.
    w_hid, _ = _linear_init(kh, proj_in_dim, proj_in_dim, bias=False)
    w_proj, _ = _linear_init(kp, proj_in_dim, proj_out_dim, bias=False)
    online = {
        "w_enc": jnp.asarray(w_enc).T,          # (in, feat)  for x @ W
        "b_enc": jnp.asarray(b_enc).reshape(1, -1),
        "w_hid": jnp.asarray(w_hid),            # dead branch in reference fwd
        "w_proj": jnp.asarray(w_proj).T,        # (feat, out)
    }
    # target_encoder = copy.deepcopy(online_encoder)
    target = jax.tree_util.tree_map(lambda a: a + 0.0, online)
    return {
        "online": online,
        "target": target,
        "stacked": _precompute_stacked(online, target, nesting_dims,
                                       proj_out_dim),
        "t_prime": jnp.zeros((1,), jnp.float32),   # unused in forward
    }


# ----------------------------------------------------------------------------
# Pure-JAX reference (same bf16 operand casts, f32 accumulate).
# ----------------------------------------------------------------------------
def _ref_branch(bp, x, nesting_dims):
    b = x.shape[0]
    xf = x.reshape(b, -1).astype(jnp.bfloat16)
    feat = jnp.maximum(
        jnp.dot(xf, bp["w_enc"].astype(jnp.bfloat16),
                preferred_element_type=jnp.float32) + bp["b_enc"], 0.0)
    fb = feat.astype(jnp.bfloat16)
    wb = bp["w_proj"].astype(jnp.bfloat16)
    return [jnp.dot(fb[:, :nd], wb[:nd, :], preferred_element_type=jnp.float32)
            for nd in nesting_dims]


if __name__ == "__main__":
    # Small shapes consistent with the module.
    B, C, H, W = 2, 4, 16, 16
    PROJ_IN_DIM = 32                                   # encoder feature size
    PROJ_OUT_DIM = 64
    # nesting_dims default: 2**i for i in 3..log2(proj_in_dim)
    NESTING_DIMS = [2 ** i for i in range(3, int(math.log2(PROJ_IN_DIM)) + 1)]
    IN_DIM = C * H * W

    key = jax.random.PRNGKey(0)
    kx1, kx2, kp = jax.random.split(key, 3)
    x1 = jax.random.normal(kx1, (B, C, H, W), jnp.float32)
    x2 = jax.random.normal(kx2, (B, C, H, W), jnp.float32)

    params = init_relic_params(kp, IN_DIM, PROJ_IN_DIM, PROJ_OUT_DIM,
                               NESTING_DIMS)

    o1, o2, t1, t2 = relic_forward(params, x1, x2, NESTING_DIMS, PROJ_OUT_DIM)
    jax.block_until_ready((o1, o2, t1, t2))

    # Correctness check against the pure-JAX reference (bf16 operands, f32
    # accumulation -> tolerance covers summation-order differences only).
    ref_o1 = _ref_branch(params["online"], x1, NESTING_DIMS)
    ref_o2 = _ref_branch(params["online"], x2, NESTING_DIMS)
    ref_t1 = _ref_branch(params["target"], x1, NESTING_DIMS)
    ref_t2 = _ref_branch(params["target"], x2, NESTING_DIMS)
    pairs = (list(zip(o1, ref_o1)) + list(zip(o2, ref_o2))
             + list(zip(t1, ref_t1)) + list(zip(t2, ref_t2)))
    for got, want in pairs:
        assert got.shape == (B, PROJ_OUT_DIM)
        assert jnp.allclose(got, want, atol=2e-2, rtol=2e-2), \
            float(jnp.max(jnp.abs(got - want)))

    # TODO(synk): update_params / copy_params (EMA target update, followed by
    # a _precompute_stacked refresh), get_features and save_encoder are
    # training/host-side utilities, not part of forward; omitted.
    print("KERNEL_OK")
</pallas_src>

<mosaic_0001>
module attributes {stable_mosaic.version = 11 : i64} {
  func.func @_relic_kernel(%arg0: i32, %arg1: memref<4x1024xbf16, #tpu.memory_space<vmem>>, %arg2: memref<1024x64xbf16, #tpu.memory_space<vmem>>, %arg3: memref<1x64xf32, #tpu.memory_space<vmem>>, %arg4: memref<64x384xbf16, #tpu.memory_space<vmem>>, %arg5: memref<4x384xf32, #tpu.memory_space<vmem>>) attributes {dimension_semantics = [#tpu.dimension_semantics<parallel>], iteration_bounds = array<i64: 1>, scalar_prefetch = 0 : i64, scratch_operands = 0 : i64, tpu.core_type = #tpu.core_type<tc>, window_params = [{transform_indices = @transform_0, window_bounds = array<i64: 4, 1024>}, {pipeline_mode = #tpu.pipeline_mode<synchronous>, transform_indices = @transform_1, window_bounds = array<i64: 1024, 64>}, {pipeline_mode = #tpu.pipeline_mode<synchronous>, transform_indices = @transform_2, window_bounds = array<i64: 1, 64>}, {pipeline_mode = #tpu.pipeline_mode<synchronous>, transform_indices = @transform_3, window_bounds = array<i64: 64, 384>}, {transform_indices = @transform_4, window_bounds = array<i64: 4, 384>}]} {
    %c0 = arith.constant 0 : index
    %c0_0 = arith.constant 0 : index
    %0 = vector.load %arg1[%c0, %c0_0] : memref<4x1024xbf16, #tpu.memory_space<vmem>>, vector<4x1024xbf16>
    %c0_1 = arith.constant 0 : index
    %c0_2 = arith.constant 0 : index
    %1 = vector.load %arg2[%c0_1, %c0_2] : memref<1024x64xbf16, #tpu.memory_space<vmem>>, vector<1024x64xbf16>
    %cst = arith.constant dense<0.000000e+00> : vector<4x64xf32>
    %2 = tpu.matmul %0, %1, %cst {dimension_numbers = #tpu.dot_dimension_numbers<[1], [0], [0], [1], [0, 0, 1, 1], [], []>} : vector<4x1024xbf16>, vector<1024x64xbf16>, vector<4x64xf32> -> vector<4x64xf32>
    %c0_3 = arith.constant 0 : index
    %c0_4 = arith.constant 0 : index
    %3 = vector.load %arg3[%c0_3, %c0_4] : memref<1x64xf32, #tpu.memory_space<vmem>>, vector<1x64xf32>
    %4 = vector.broadcast %3 : vector<1x64xf32> to vector<4x64xf32>
    %5 = arith.addf %2, %4 : vector<4x64xf32>
    %cst_5 = arith.constant 0.000000e+00 : f32
    %6 = vector.broadcast %cst_5 : f32 to vector<4x64xf32>
    %7 = arith.maximumf %5, %6 : vector<4x64xf32>
    %8 = arith.truncf %7 : vector<4x64xf32> to vector<4x64xbf16>
    %c0_6 = arith.constant 0 : index
    %c0_7 = arith.constant 0 : index
    %9 = vector.load %arg4[%c0_6, %c0_7] : memref<64x384xbf16, #tpu.memory_space<vmem>>, vector<64x384xbf16>
    %cst_8 = arith.constant dense<0.000000e+00> : vector<4x384xf32>
    %10 = tpu.matmul %8, %9, %cst_8 {dimension_numbers = #tpu.dot_dimension_numbers<[1], [0], [0], [1], [0, 0, 1, 1], [], []>} : vector<4x64xbf16>, vector<64x384xbf16>, vector<4x384xf32> -> vector<4x384xf32>
    %c0_9 = arith.constant 0 : index
    %c0_10 = arith.constant 0 : index
    %11 = vector.load %arg5[%c0_9, %c0_10] : memref<4x384xf32, #tpu.memory_space<vmem>>, vector<4x384xf32>
    tpu.vector_store %arg5[%c0_9, %c0_10], %10 {strides = array<i32>} : memref<4x384xf32, #tpu.memory_space<vmem>>, vector<4x384xf32>,
    return
  }
  func.func @transform_0(%arg0: i32) -> (i32, i32) {
    %c0_i32 = arith.constant 0 : i32
    %c0_i32_0 = arith.constant 0 : i32
    return %arg0, %c0_i32 : i32, i32
  }
  func.func @transform_1(%arg0: i32) -> (i32, i32) {
    %c0_i32 = arith.constant 0 : i32
    %c0_i32_0 = arith.constant 0 : i32
    %c0_i32_1 = arith.constant 0 : i32
    return %c0_i32, %c0_i32_0 : i32, i32
  }
  func.func @transform_2(%arg0: i32) -> (i32, i32) {
    %c0_i32 = arith.constant 0 : i32
    %c0_i32_0 = arith.constant 0 : i32
    %c0_i32_1 = arith.constant 0 : i32
    return %c0_i32, %c0_i32_0 : i32, i32
  }
  func.func @transform_3(%arg0: i32) -> (i32, i32) {
    %c0_i32 = arith.constant 0 : i32
    %c0_i32_0 = arith.constant 0 : i32
    %c0_i32_1 = arith.constant 0 : i32
    return %c0_i32, %c0_i32_0 : i32, i32
  }
  func.func @transform_4(%arg0: i32) -> (i32, i32) {
    %c0_i32 = arith.constant 0 : i32
    %c0_i32_0 = arith.constant 0 : i32
    return %arg0, %c0_i32 : i32, i32
  }
}

</mosaic_0001>

<llo_original>
// kernel: tpu_custom_call.1
$region0: #{tpu_custom_call.1}
  #allocation0 [shape = 'u32[]', space=smem, size = 0x4, offset = 0x4, fixed_abs, tag = 'smem constant byte address 0x4 - core index']
  #allocation1 [shape = 'u32[144,128]{1,0:T(1,128)}', space=vmem, size = 0x12000, scoped, tag = 'internal scratch']
  %s0 = inlined_call_operand.vmem [shape: bf16[4,1024], index: 0, kind: input, shape index: {}]
  %s1 = inlined_call_operand.vmem [shape: bf16[1024,64], index: 1, kind: input, shape index: {}]
  %s2 = inlined_call_operand.vmem [shape: f32[1,64], index: 2, kind: input, shape index: {}]
  %s3 = inlined_call_operand.vmem [shape: bf16[64,384], index: 3, kind: input, shape index: {}]
  %s4 = inlined_call_operand.hbm [shape: f32[4,384], index: 4, kind: output, shape index: {}]
  %s5 = sld [smem:[#allocation0]]
  $region26: #{tpu_custom_call.1} parent=0
    _
  %s7 = ssub.s32 1, %s5
  %s8 = scalar_select 0, %s7, %s5
  $region1: #{tpu_custom_call.1} parent=0
    #allocation2 [shape = 'u8[6144]{0}', space=vmem, size = 0x1800, scoped, tag = 'output window, operand 0, single buffered']
    #allocation3 [shape = 's32[1]{0}', space=sflag, size = 0x4, scoped, tag = 'scoped memory for tpu_custom_call.1']
    %9 = vsyncpa [#allocation3], 0
    // Predicated region
    $region2: #{tpu_custom_call.1} parent=1 // pred_check
      _
    $region3: #{tpu_custom_call.1} parent=1 // pred_check_branch
      %11 = sbr.rel (0) target = $region5
    $region4: #{tpu_custom_call.1} parent=1 // pred_region
      _
    $region5: #{tpu_custom_call.1} parent=1 // pred_fallthru
      _
    // Predicated region
    $region6: #{tpu_custom_call.1} parent=1 // pred_check
      _
    $region7: #{tpu_custom_call.1} parent=1 // pred_check_branch
      %13 = sbr.rel (0) target = $region9
    $region8: #{tpu_custom_call.1} parent=1 // pred_region
      _
    $region9: #{tpu_custom_call.1} parent=1 // pred_fallthru
      _
    // Predicated region
    $region10: #{tpu_custom_call.1} parent=1 // pred_check
      _
    $region11: #{tpu_custom_call.1} parent=1 // pred_check_branch
      %15 = sbr.rel (0) target = $region13
    $region12: #{tpu_custom_call.1} parent=1 // pred_region
      _
    $region13: #{tpu_custom_call.1} parent=1 // pred_fallthru
      _
    // Predicated region
    $region14: #{tpu_custom_call.1} parent=1 // pred_check
      _
    $region15: #{tpu_custom_call.1} parent=1 // pred_check_branch
      %17 = sbr.rel (0) target = $region17
    $region16: #{tpu_custom_call.1} parent=1 // pred_region
      _
    $region17: #{tpu_custom_call.1} parent=1 // pred_fallthru
      _
    %v19 = vld [vmem:[%s0] sm:$0xff]
    %v20 = vld [vmem:[%s0 + $0x8] sm:$0xff]
    %v21 = vld [vmem:[%s1] sm:$0xf]
    %v22 = vld [vmem:[%s1 + $0x4] sm:$0xf]
    %v23 = vld [vmem:[%s1 + $0x8] sm:$0xf]
    %v24 = vld [vmem:[%s1 + $0xc] sm:$0xf]
    %v25 = vld [vmem:[%s1 + $0x10] sm:$0xf]
    %v26 = vld [vmem:[%s1 + $0x14] sm:$0xf]
    %v27 = vld [vmem:[%s1 + $0x18] sm:$0xf]
    %v28 = vld [vmem:[%s1 + $0x1c] sm:$0xf]
    %v29 = vld [vmem:[%s1 + $0x20] sm:$0xf]
    %v30 = vld [vmem:[%s1 + $0x24] sm:$0xf]
    %v31 = vld [vmem:[%s1 + $0x28] sm:$0xf]
    %v32 = vld [vmem:[%s1 + $0x2c] sm:$0xf]
    %v33 = vld [vmem:[%s1 + $0x30] sm:$0xf]
    %v34 = vld [vmem:[%s1 + $0x34] sm:$0xf]
    %v35 = vld [vmem:[%s1 + $0x38] sm:$0xf]
    %v36 = vld [vmem:[%s1 + $0x3c] sm:$0xf]
    %v37 = vld [vmem:[%s1 + $0x40] sm:$0xf]
    %v38 = vld [vmem:[%s1 + $0x44] sm:$0xf]
    %v39 = vld [vmem:[%s1 + $0x48] sm:$0xf]
    %v40 = vld [vmem:[%s1 + $0x4c] sm:$0xf]
    %v41 = vld [vmem:[%s1 + $0x50] sm:$0xf]
    %v42 = vld [vmem:[%s1 + $0x54] sm:$0xf]
    %v43 = vld [vmem:[%s1 + $0x58] sm:$0xf]
    %v44 = vld [vmem:[%s1 + $0x5c] sm:$0xf]
    %v45 = vld [vmem:[%s1 + $0x60] sm:$0xf]
    %v46 = vld [vmem:[%s1 + $0x64] sm:$0xf]
    %v47 = vld [vmem:[%s1 + $0x68] sm:$0xf]
    %v48 = vld [vmem:[%s1 + $0x6c] sm:$0xf]
    %v49 = vld [vmem:[%s1 + $0x70] sm:$0xf]
    %v50 = vld [vmem:[%s1 + $0x74] sm:$0xf]
    %v51 = vld [vmem:[%s1 + $0x78] sm:$0xf]
    %v52 = vld [vmem:[%s1 + $0x7c] sm:$0xf]
    %v53 = vld [vmem:[%s1 + $0x80] sm:$0xf]
    %v54 = vld [vmem:[%s1 + $0x84] sm:$0xf]
    %v55 = vld [vmem:[%s1 + $0x88] sm:$0xf]
    %v56 = vld [vmem:[%s1 + $0x8c] sm:$0xf]
    %v57 = vld [vmem:[%s1 + $0x90] sm:$0xf]
    %v58 = vld [vmem:[%s1 + $0x94] sm:$0xf]
    %v59 = vld [vmem:[%s1 + $0x98] sm:$0xf]
    %v60 = vld [vmem:[%s1 + $0x9c] sm:$0xf]
    %v61 = vld [vmem:[%s1 + $0xa0] sm:$0xf]
    %v62 = vld [vmem:[%s1 + $0xa4] sm:$0xf]
    %v63 = vld [vmem:[%s1 + $0xa8] sm:$0xf]
    %v64 = vld [vmem:[%s1 + $0xac] sm:$0xf]
    %v65 = vld [vmem:[%s1 + $0xb0] sm:$0xf]
    %v66 = vld [vmem:[%s1 + $0xb4] sm:$0xf]
    %v67 = vld [vmem:[%s1 + $0xb8] sm:$0xf]
    %v68 = vld [vmem:[%s1 + $0xbc] sm:$0xf]
    %v69 = vld [vmem:[%s1 + $0xc0] sm:$0xf]
    %v70 = vld [vmem:[%s1 + $0xc4] sm:$0xf]
    %v71 = vld [vmem:[%s1 + $0xc8] sm:$0xf]
    %v72 = vld [vmem:[%s1 + $0xcc] sm:$0xf]
    %v73 = vld [vmem:[%s1 + $0xd0] sm:$0xf]
    %v74 = vld [vmem:[%s1 + $0xd4] sm:$0xf]
    %v75 = vld [vmem:[%s1 + $0xd8] sm:$0xf]
    %v76 = vld [vmem:[%s1 + $0xdc] sm:$0xf]
    %v77 = vld [vmem:[%s1 + $0xe0] sm:$0xf]
    %v78 = vld [vmem:[%s1 + $0xe4] sm:$0xf]
    %v79 = vld [vmem:[%s1 + $0xe8] sm:$0xf]
    %v80 = vld [vmem:[%s1 + $0xec] sm:$0xf]
    %v81 = vld [vmem:[%s1 + $0xf0] sm:$0xf]
    %v82 = vld [vmem:[%s1 + $0xf4] sm:$0xf]
    %v83 = vld [vmem:[%s1 + $0xf8] sm:$0xf]
    %v84 = vld [vmem:[%s1 + $0xfc] sm:$0xf]
    %v85 = vld [vmem:[%s1 + $0x100] sm:$0xf]
    %v86 = vld [vmem:[%s1 + $0x104] sm:$0xf]
    %v87 = vld [vmem:[%s1 + $0x108] sm:$0xf]
    %v88 = vld [vmem:[%s1 + $0x10c] sm:$0xf]
    %v89 = vld [vmem:[%s1 + $0x110] sm:$0xf]
    %v90 = vld [vmem:[%s1 + $0x114] sm:$0xf]
    %v91 = vld [vmem:[%s1 + $0x118] sm:$0xf]
    %v92 = vld [vmem:[%s1 + $0x11c] sm:$0xf]
    %v93 = vld [vmem:[%s1 + $0x120] sm:$0xf]
    %v94 = vld [vmem:[%s1 + $0x124] sm:$0xf]
    %v95 = vld [vmem:[%s1 + $0x128] sm:$0xf]
    %v96 = vld [vmem:[%s1 + $0x12c] sm:$0xf]
    %v97 = vld [vmem:[%s1 + $0x130] sm:$0xf]
    %v98 = vld [vmem:[%s1 + $0x134] sm:$0xf]
    %v99 = vld [vmem:[%s1 + $0x138] sm:$0xf]
    %v100 = vld [vmem:[%s1 + $0x13c] sm:$0xf]
    %v101 = vld [vmem:[%s1 + $0x140] sm:$0xf]
    %v102 = vld [vmem:[%s1 + $0x144] sm:$0xf]
    %v103 = vld [vmem:[%s1 + $0x148] sm:$0xf]
    %v104 = vld [vmem:[%s1 + $0x14c] sm:$0xf]
    %v105 = vld [vmem:[%s1 + $0x150] sm:$0xf]
    %v106 = vld [vmem:[%s1 + $0x154] sm:$0xf]
    %v107 = vld [vmem:[%s1 + $0x158] sm:$0xf]
    %v108 = vld [vmem:[%s1 + $0x15c] sm:$0xf]
    %v109 = vld [vmem:[%s1 + $0x160] sm:$0xf]
    %v110 = vld [vmem:[%s1 + $0x164] sm:$0xf]
    %v111 = vld [vmem:[%s1 + $0x168] sm:$0xf]
    %v112 = vld [vmem:[%s1 + $0x16c] sm:$0xf]
    %v113 = vld [vmem:[%s1 + $0x170] sm:$0xf]
    %v114 = vld [vmem:[%s1 + $0x174] sm:$0xf]
    %v115 = vld [vmem:[%s1 + $0x178] sm:$0xf]
    %v116 = vld [vmem:[%s1 + $0x17c] sm:$0xf]
    %v117 = vld [vmem:[%s1 + $0x180] sm:$0xf]
    %v118 = vld [vmem:[%s1 + $0x184] sm:$0xf]
    %v119 = vld [vmem:[%s1 + $0x188] sm:$0xf]
    %v120 = vld [vmem:[%s1 + $0x18c] sm:$0xf]
    %v121 = vld [vmem:[%s1 + $0x190] sm:$0xf]
    %v122 = vld [vmem:[%s1 + $0x194] sm:$0xf]
    %v123 = vld [vmem:[%s1 + $0x198] sm:$0xf]
    %v124 = vld [vmem:[%s1 + $0x19c] sm:$0xf]
    %v125 = vld [vmem:[%s1 + $0x1a0] sm:$0xf]
    %v126 = vld [vmem:[%s1 + $0x1a4] sm:$0xf]
    %v127 = vld [vmem:[%s1 + $0x1a8] sm:$0xf]
    %v128 = vld [vmem:[%s1 + $0x1ac] sm:$0xf]
    %v129 = vld [vmem:[%s1 + $0x1b0] sm:$0xf]
    %v130 = vld [vmem:[%s1 + $0x1b4] sm:$0xf]
    %v131 = vld [vmem:[%s1 + $0x1b8] sm:$0xf]
    %v132 = vld [vmem:[%s1 + $0x1bc] sm:$0xf]
    %v133 = vld [vmem:[%s1 + $0x1c0] sm:$0xf]
    %v134 = vld [vmem:[%s1 + $0x1c4] sm:$0xf]
    %v135 = vld [vmem:[%s1 + $0x1c8] sm:$0xf]
    %v136 = vld [vmem:[%s1 + $0x1cc] sm:$0xf]
    %v137 = vld [vmem:[%s1 + $0x1d0] sm:$0xf]
    %v138 = vld [vmem:[%s1 + $0x1d4] sm:$0xf]
    %v139 = vld [vmem:[%s1 + $0x1d8] sm:$0xf]
    %v140 = vld [vmem:[%s1 + $0x1dc] sm:$0xf]
    %v141 = vld [vmem:[%s1 + $0x1e0] sm:$0xf]
    %v142 = vld [vmem:[%s1 + $0x1e4] sm:$0xf]
    %v143 = vld [vmem:[%s1 + $0x1e8] sm:$0xf]
    %v144 = vld [vmem:[%s1 + $0x1ec] sm:$0xf]
    %v145 = vld [vmem:[%s1 + $0x1f0] sm:$0xf]
    %v146 = vld [vmem:[%s1 + $0x1f4] sm:$0xf]
    %v147 = vld [vmem:[%s1 + $0x1f8] sm:$0xf]
    %v148 = vld [vmem:[%s1 + $0x1fc] sm:$0xf]
    %v149 = vld [vmem:[%s2] sm:$0x1]
    %v151 = vlaneseq
    %v152 = vshrl.u32 %v151, 7
    %v153 = vsub.s32 0, %v152
    %v154 = vrot.slane %v149, %v153
    %v158 = vcombine.high %v19, %v19
    %v160 = vunpack.c.l.s4 1983009808
    %v161 = vunpack.c.0.s8 %v160
    %v162 = vlaneseq
    %v163 = vshrl.u32 %v162, 7
    %v164 = vsub.s32 %v161, %v163
    %v165 = vrot.slane %v19, %v164
    %v167 = vunpack.c.l.s4 1983009808
    %v168 = vunpack.c.0.s8 %v167
    %v169 = vlaneseq
    %v170 = vshrl.u32 %v169, 7
    %v171 = vsub.s32 %v168, %v170
    %v172 = vrot.slane %v158, %v171
    %v173 = vcombine.high %v165, %v165
    %v174 = vcombine.high %v172, %v172
    %v175 = vcombine.high %v20, %v20
    %v177 = vunpack.c.l.s4 1983009808
    %v178 = vunpack.c.0.s8 %v177
    %v179 = vlaneseq
    %v180 = vshrl.u32 %v179, 7
    %v181 = vsub.s32 %v178, %v180
    %v182 = vrot.slane %v20, %v181
    %v184 = vunpack.c.l.s4 1983009808
    %v185 = vunpack.c.0.s8 %v184
    %v186 = vlaneseq
    %v187 = vshrl.u32 %v186, 7
    %v188 = vsub.s32 %v185, %v187
    %v189 = vrot.slane %v175, %v188
    %v190 = vcombine.high %v182, %v182
    %v191 = vcombine.high %v189, %v189
    %v328 = vunpack.c.l.b16 %v21
    %v329 = vunpack.c.l.b16 %v22
    %v330 = vunpack.c.l.b16 %v23
    %v331 = vunpack.c.l.b16 %v24
    %v332 = vunpack.c.l.b16 %v25
    %v333 = vunpack.c.l.b16 %v26
    %v334 = vunpack.c.l.b16 %v27
    %v335 = vunpack.c.l.b16 %v28
    %v336 = vunpack.c.l.b16 %v29
    %v337 = vunpack.c.l.b16 %v30
    %v338 = vunpack.c.l.b16 %v31
    %v339 = vunpack.c.l.b16 %v32
    %v340 = vunpack.c.l.b16 %v33
    %v341 = vunpack.c.l.b16 %v34
    %v342 = vunpack.c.l.b16 %v35
    %v343 = vunpack.c.l.b16 %v36
    %v344 = vunpack.c.l.b16 %v37
    %v345 = vunpack.c.l.b16 %v38
    %v346 = vunpack.c.l.b16 %v39
    %v347 = vunpack.c.l.b16 %v40
    %v348 = vunpack.c.l.b16 %v41
    %v349 = vunpack.c.l.b16 %v42
    %v350 = vunpack.c.l.b16 %v43
    %v351 = vunpack.c.l.b16 %v44
    %v352 = vunpack.c.l.b16 %v45
    %v353 = vunpack.c.l.b16 %v46
    %v354 = vunpack.c.l.b16 %v47
    %v355 = vunpack.c.l.b16 %v48
    %v356 = vunpack.c.l.b16 %v49
    %v357 = vunpack.c.l.b16 %v50
    %v358 = vunpack.c.l.b16 %v51
    %v359 = vunpack.c.l.b16 %v52
    %v360 = vunpack.c.l.b16 %v53
    %v361 = vunpack.c.l.b16 %v54
    %v362 = vunpack.c.l.b16 %v55
    %v363 = vunpack.c.l.b16 %v56
    %v364 = vunpack.c.l.b16 %v57
    %v365 = vunpack.c.l.b16 %v58
    %v366 = vunpack.c.l.b16 %v59
    %v367 = vunpack.c.l.b16 %v60
    %v368 = vunpack.c.l.b16 %v61
    %v369 = vunpack.c.l.b16 %v62
    %v370 = vunpack.c.l.b16 %v63
    %v371 = vunpack.c.l.b16 %v64
    %v372 = vunpack.c.l.b16 %v65
    %v373 = vunpack.c.l.b16 %v66
    %v374 = vunpack.c.l.b16 %v67
    %v375 = vunpack.c.l.b16 %v68
    %v376 = vunpack.c.l.b16 %v69
    %v377 = vunpack.c.l.b16 %v70
    %v378 = vunpack.c.l.b16 %v71
    %v379 = vunpack.c.l.b16 %v72
    %v380 = vunpack.c.l.b16 %v73
    %v381 = vunpack.c.l.b16 %v74
    %v382 = vunpack.c.l.b16 %v75
    %v383 = vunpack.c.l.b16 %v76
    %v384 = vunpack.c.l.b16 %v77
    %v385 = vunpack.c.l.b16 %v78
    %v386 = vunpack.c.l.b16 %v79
    %v387 = vunpack.c.l.b16 %v80
    %v388 = vunpack.c.l.b16 %v81
    %v389 = vunpack.c.l.b16 %v82
    %v390 = vunpack.c.l.b16 %v83
    %v391 = vunpack.c.l.b16 %v84
    %v392 = vunpack.c.l.b16 %v85
    %v393 = vunpack.c.l.b16 %v86
    %v394 = vunpack.c.l.b16 %v87
    %v395 = vunpack.c.l.b16 %v88
    %v396 = vunpack.c.l.b16 %v89
    %v397 = vunpack.c.l.b16 %v90
    %v398 = vunpack.c.l.b16 %v91
    %v399 = vunpack.c.l.b16 %v92
    %v400 = vunpack.c.l.b16 %v93
    %v401 = vunpack.c.l.b16 %v94
    %v402 = vunpack.c.l.b16 %v95
    %v403 = vunpack.c.l.b16 %v96
    %v404 = vunpack.c.l.b16 %v97
    %v405 = vunpack.c.l.b16 %v98
    %v406 = vunpack.c.l.b16 %v99
    %v407 = vunpack.c.l.b16 %v100
    %v408 = vunpack.c.l.b16 %v101
    %v409 = vunpack.c.l.b16 %v102
    %v410 = vunpack.c.l.b16 %v103
    %v411 = vunpack.c.l.b16 %v104
    %v412 = vunpack.c.l.b16 %v105
    %v413 = vunpack.c.l.b16 %v106
    %v414 = vunpack.c.l.b16 %v107
    %v415 = vunpack.c.l.b16 %v108
    %v416 = vunpack.c.l.b16 %v109
    %v417 = vunpack.c.l.b16 %v110
    %v418 = vunpack.c.l.b16 %v111
    %v419 = vunpack.c.l.b16 %v112
    %v420 = vunpack.c.l.b16 %v113
    %v421 = vunpack.c.l.b16 %v114
    %v422 = vunpack.c.l.b16 %v115
    %v423 = vunpack.c.l.b16 %v116
    %v424 = vunpack.c.l.b16 %v117
    %v425 = vunpack.c.l.b16 %v118
    %v426 = vunpack.c.l.b16 %v119
    %v427 = vunpack.c.l.b16 %v120
    %v428 = vunpack.c.l.b16 %v121
    %v429 = vunpack.c.l.b16 %v122
    %v430 = vunpack.c.l.b16 %v123
    %v431 = vunpack.c.l.b16 %v124
    %v432 = vunpack.c.l.b16 %v125
    %v433 = vunpack.c.l.b16 %v126
    %v434 = vunpack.c.l.b16 %v127
    %v435 = vunpack.c.l.b16 %v128
    %v436 = vunpack.c.l.b16 %v129
    %v437 = vunpack.c.l.b16 %v130
    %v438 = vunpack.c.l.b16 %v131
    %v439 = vunpack.c.l.b16 %v132
    %v440 = vunpack.c.l.b16 %v133
    %v441 = vunpack.c.l.b16 %v134
    %v442 = vunpack.c.l.b16 %v135
    %v443 = vunpack.c.l.b16 %v136
    %v444 = vunpack.c.l.b16 %v137
    %v445 = vunpack.c.l.b16 %v138
    %v446 = vunpack.c.l.b16 %v139
    %v447 = vunpack.c.l.b16 %v140
    %v448 = vunpack.c.l.b16 %v141
    %v449 = vunpack.c.l.b16 %v142
    %v450 = vunpack.c.l.b16 %v143
    %v451 = vunpack.c.l.b16 %v144
    %v452 = vunpack.c.l.b16 %v145
    %v453 = vunpack.c.l.b16 %v146
    %v454 = vunpack.c.l.b16 %v147
    %v455 = vunpack.c.l.b16 %v148
    %v456 = vpack.c.b16 %v329, %v328
    %v457 = vpack.c.b16 %v331, %v330
    %v458 = vpack.c.b16 %v333, %v332
    %v459 = vpack.c.b16 %v335, %v334
    %v460 = vpack.c.b16 %v337, %v336
    %v461 = vpack.c.b16 %v339, %v338
    %v462 = vpack.c.b16 %v341, %v340
    %v463 = vpack.c.b16 %v343, %v342
    %v464 = vpack.c.b16 %v345, %v344
    %v465 = vpack.c.b16 %v347, %v346
    %v466 = vpack.c.b16 %v349, %v348
    %v467 = vpack.c.b16 %v351, %v350
    %v468 = vpack.c.b16 %v353, %v352
    %v469 = vpack.c.b16 %v355, %v354
    %v470 = vpack.c.b16 %v357, %v356
    %v471 = vpack.c.b16 %v359, %v358
    %v472 = vpack.c.b16 %v361, %v360
    %v473 = vpack.c.b16 %v363, %v362
    %v474 = vpack.c.b16 %v365, %v364
    %v475 = vpack.c.b16 %v367, %v366
    %v476 = vpack.c.b16 %v369, %v368
    %v477 = vpack.c.b16 %v371, %v370
    %v478 = vpack.c.b16 %v373, %v372
    %v479 = vpack.c.b16 %v375, %v374
    %v480 = vpack.c.b16 %v377, %v376
    %v481 = vpack.c.b16 %v379, %v378
    %v482 = vpack.c.b16 %v381, %v380
    %v483 = vpack.c.b16 %v383, %v382
    %v484 = vpack.c.b16 %v385, %v384
    %v485 = vpack.c.b16 %v387, %v386
    %v486 = vpack.c.b16 %v389, %v388
    %v487 = vpack.c.b16 %v391, %v390
    %v488 = vpack.c.b16 %v393, %v392
    %v489 = vpack.c.b16 %v395, %v394
    %v490 = vpack.c.b16 %v397, %v396
    %v491 = vpack.c.b16 %v399, %v398
    %v492 = vpack.c.b16 %v401, %v400
    %v493 = vpack.c.b16 %v403, %v402
    %v494 = vpack.c.b16 %v405, %v404
    %v495 = vpack.c.b16 %v407, %v406
    %v496 = vpack.c.b16 %v409, %v408
    %v497 = vpack.c.b16 %v411, %v410
    %v498 = vpack.c.b16 %v413, %v412
    %v499 = vpack.c.b16 %v415, %v414
    %v500 = vpack.c.b16 %v417, %v416
    %v501 = vpack.c.b16 %v419, %v418
    %v502 = vpack.c.b16 %v421, %v420
    %v503 = vpack.c.b16 %v423, %v422
    %v504 = vpack.c.b16 %v425, %v424
    %v505 = vpack.c.b16 %v427, %v426
    %v506 = vpack.c.b16 %v429, %v428
    %v507 = vpack.c.b16 %v431, %v430
    %v508 = vpack.c.b16 %v433, %v432
    %v509 = vpack.c.b16 %v435, %v434
    %v510 = vpack.c.b16 %v437, %v436
    %v511 = vpack.c.b16 %v439, %v438
    %v512 = vpack.c.b16 %v441, %v440
    %v513 = vpack.c.b16 %v443, %v442
    %v514 = vpack.c.b16 %v445, %v444
    %v515 = vpack.c.b16 %v447, %v446
    %v516 = vpack.c.b16 %v449, %v448
    %v517 = vpack.c.b16 %v451, %v450
    %v518 = vpack.c.b16 %v453, %v452
    %v519 = vpack.c.b16 %v455, %v454
    %584 = vmatprep.subr.bf16.mxu0 0
    %585 = vmatpush1.bf16.msra.mxu0 %v456
    %586 = vmatprep.subr.bf16.mxu0 0
    %587 = vmatpush1.bf16.msra.mxu0 %v457
    %588 = vmatprep.subr.bf16.mxu0 0
    %589 = vmatpush1.bf16.msra.mxu0 %v458
    %590 = vmatprep.subr.bf16.mxu0 0
    %591 = vmatpush1.bf16.msra.mxu0 %v459
    %592 = vmatprep.subr.bf16.mxu0 0
    %593 = vmatpush1.bf16.msra.mxu0 %v460
    %594 = vmatprep.subr.bf16.mxu0 0
    %595 = vmatpush1.bf16.msra.mxu0 %v461
    %596 = vmatprep.subr.bf16.mxu0 0
    %597 = vmatpush1.bf16.msra.mxu0 %v462
    %598 = vmatprep.subr.bf16.mxu0 0
    %599 = vmatpush1.bf16.msra.mxu0 %v463
    %600 = vmatprep.subr.bf16.mxu0 0
    %601 = vmatpush1.bf16.msra.mxu0 %v464
    %602 = vmatprep.subr.bf16.mxu0 0
    %603 = vmatpush1.bf16.msra.mxu0 %v465
    %604 = vmatprep.subr.bf16.mxu0 0
    %605 = vmatpush1.bf16.msra.mxu0 %v466
    %606 = vmatprep.subr.bf16.mxu0 0
    %607 = vmatpush1.bf16.msra.mxu0 %v467
    %608 = vmatprep.subr.bf16.mxu0 0
    %609 = vmatpush1.bf16.msra.mxu0 %v468
    %610 = vmatprep.subr.bf16.mxu0 0
    %611 = vmatpush1.bf16.msra.mxu0 %v469
    %612 = vmatprep.subr.bf16.mxu0 0
    %613 = vmatpush1.bf16.msra.mxu0 %v470
    %614 = vmatprep.subr.bf16.mxu0 0
    %615 = vmatpush1.bf16.msra.mxu0 %v471
    %616 = vmatprep.mubr.bf16.mxu0 %v173
    %617 = vmatmul.mubr.bf16.gmra.mrb[0].mxu0 %v165
    %v618 = vpop.f32.mrb[0].mxu0
    %v619 = vadd.f32 %v154, %v618
    %v620 = vpop.f32.mrb[0].mxu0
    %v621 = vpop.f32.mrb[0].mxu0
    %v622 = vpop.f32.mrb[0].mxu0
    %623 = vdwg.mxu0
    %624 = vmatprep.subr.bf16.mxu0 0
    %625 = vmatpush1.bf16.msra.mxu0 %v472
    %626 = vmatprep.subr.bf16.mxu0 0
    %627 = vmatpush1.bf16.msra.mxu0 %v473
    %628 = vmatprep.subr.bf16.mxu0 0
    %629 = vmatpush1.bf16.msra.mxu0 %v474
    %630 = vmatprep.subr.bf16.mxu0 0
    %631 = vmatpush1.bf16.msra.mxu0 %v475
    %632 = vmatprep.subr.bf16.mxu0 0
    %633 = vmatpush1.bf16.msra.mxu0 %v476
    %634 = vmatprep.subr.bf16.mxu0 0
    %635 = vmatpush1.bf16.msra.mxu0 %v477
    %636 = vmatprep.subr.bf16.mxu0 0
    %637 = vmatpush1.bf16.msra.mxu0 %v478
    %638 = vmatprep.subr.bf16.mxu0 0
    %639 = vmatpush1.bf16.msra.mxu0 %v479
    %640 = vmatprep.subr.bf16.mxu0 0
    %641 = vmatpush1.bf16.msra.mxu0 %v480
    %642 = vmatprep.subr.bf16.mxu0 0
    %643 = vmatpush1.bf16.msra.mxu0 %v481
    %644 = vmatprep.subr.bf16.mxu0 0
    %645 = vmatpush1.bf16.msra.mxu0 %v482
    %646 = vmatprep.subr.bf16.mxu0 0
    %647 = vmatpush1.bf16.msra.mxu0 %v483
    %648 = vmatprep.subr.bf16.mxu0 0
    %649 = vmatpush1.bf16.msra.mxu0 %v484
    %650 = vmatprep.subr.bf16.mxu0 0
    %651 = vmatpush1.bf16.msra.mxu0 %v485
    %652 = vmatprep.subr.bf16.mxu0 0
    %653 = vmatpush1.bf16.msra.mxu0 %v486
    %654 = vmatprep.subr.bf16.mxu0 0
    %655 = vmatpush1.bf16.msra.mxu0 %v487
    %656 = vmatprep.mubr.bf16.mxu0 %v174
    %657 = vmatmul.mubr.bf16.gmra.mrb[0].mxu0 %v172
    %v658 = vpop.f32.mrb[0].mxu0
    %v659 = vadd.f32 %v619, %v658
    %v660 = vpop.f32.mrb[0].mxu0
    %v661 = vpop.f32.mrb[0].mxu0
    %v662 = vpop.f32.mrb[0].mxu0
    %663 = vdwg.mxu0
    %664 = vmatprep.subr.bf16.mxu0 0
    %665 = vmatpush1.bf16.msra.mxu0 %v488
    %666 = vmatprep.subr.bf16.mxu0 0
    %667 = vmatpush1.bf16.msra.mxu0 %v489
    %668 = vmatprep.subr.bf16.mxu0 0
    %669 = vmatpush1.bf16.msra.mxu0 %v490
    %670 = vmatprep.subr.bf16.mxu0 0
    %671 = vmatpush1.bf16.msra.mxu0 %v491
    %672 = vmatprep.subr.bf16.mxu0 0
    %673 = vmatpush1.bf16.msra.mxu0 %v492
    %674 = vmatprep.subr.bf16.mxu0 0
    %675 = vmatpush1.bf16.msra.mxu0 %v493
    %676 = vmatprep.subr.bf16.mxu0 0
    %677 = vmatpush1.bf16.msra.mxu0 %v494
    %678 = vmatprep.subr.bf16.mxu0 0
    %679 = vmatpush1.bf16.msra.mxu0 %v495
    %680 = vmatprep.subr.bf16.mxu0 0
    %681 = vmatpush1.bf16.msra.mxu0 %v496
    %682 = vmatprep.subr.bf16.mxu0 0
    %683 = vmatpush1.bf16.msra.mxu0 %v497
    %684 = vmatprep.subr.bf16.mxu0 0
    %685 = vmatpush1.bf16.msra.mxu0 %v498
    %686 = vmatprep.subr.bf16.mxu0 0
    %687 = vmatpush1.bf16.msra.mxu0 %v499
    %688 = vmatprep.subr.bf16.mxu0 0
    %689 = vmatpush1.bf16.msra.mxu0 %v500
    %690 = vmatprep.subr.bf16.mxu0 0
    %691 = vmatpush1.bf16.msra.mxu0 %v501
    %692 = vmatprep.subr.bf16.mxu0 0
    %693 = vmatpush1.bf16.msra.mxu0 %v502
    %694 = vmatprep.subr.bf16.mxu0 0
    %695 = vmatpush1.bf16.msra.mxu0 %v503
    %696 = vmatprep.mubr.bf16.mxu0 %v190
    %697 = vmatmul.mubr.bf16.gmra.mrb[0].mxu0 %v182
    %v698 = vpop.f32.mrb[0].mxu0
    %v699 = vadd.f32 %v659, %v698
    %v700 = vpop.f32.mrb[0].mxu0
    %v701 = vpop.f32.mrb[0].mxu0
    %v702 = vpop.f32.mrb[0].mxu0
    %703 = vdwg.mxu0
    %704 = vmatprep.subr.bf16.mxu0 0
    %705 = vmatpush1.bf16.msra.mxu0 %v504
    %706 = vmatprep.subr.bf16.mxu0 0
    %707 = vmatpush1.bf16.msra.mxu0 %v505
    %708 = vmatprep.subr.bf16.mxu0 0
    %709 = vmatpush1.bf16.msra.mxu0 %v506
    %710 = vmatprep.subr.bf16.mxu0 0
    %711 = vmatpush1.bf16.msra.mxu0 %v507
    %712 = vmatprep.subr.bf16.mxu0 0
    %713 = vmatpush1.bf16.msra.mxu0 %v508
    %714 = vmatprep.subr.bf16.mxu0 0
    %715 = vmatpush1.bf16.msra.mxu0 %v509
    %716 = vmatprep.subr.bf16.mxu0 0
    %717 = vmatpush1.bf16.msra.mxu0 %v510
    %718 = vmatprep.subr.bf16.mxu0 0
    %719 = vmatpush1.bf16.msra.mxu0 %v511
    %720 = vmatprep.subr.bf16.mxu0 0
    %721 = vmatpush1.bf16.msra.mxu0 %v512
    %722 = vmatprep.subr.bf16.mxu0 0
    %723 = vmatpush1.bf16.msra.mxu0 %v513
    %724 = vmatprep.subr.bf16.mxu0 0
    %725 = vmatpush1.bf16.msra.mxu0 %v514
    %726 = vmatprep.subr.bf16.mxu0 0
    %727 = vmatpush1.bf16.msra.mxu0 %v515
    %728 = vmatprep.subr.bf16.mxu0 0
    %729 = vmatpush1.bf16.msra.mxu0 %v516
    %730 = vmatprep.subr.bf16.mxu0 0
    %731 = vmatpush1.bf16.msra.mxu0 %v517
    %732 = vmatprep.subr.bf16.mxu0 0
    %733 = vmatpush1.bf16.msra.mxu0 %v518
    %734 = vmatprep.subr.bf16.mxu0 0
    %735 = vmatpush1.bf16.msra.mxu0 %v519
    %736 = vmatprep.mubr.bf16.mxu0 %v191
    %737 = vmatmul.mubr.bf16.gmra.mrb[0].mxu0 %v189
    %v738 = vpop.f32.mrb[0].mxu0
    %v739 = vadd.f32 %v699, %v738
    %v740 = vpop.f32.mrb[0].mxu0
    %v741 = vpop.f32.mrb[0].mxu0
    %v742 = vpop.f32.mrb[0].mxu0
    %743 = vdwg.mxu0
    %v744 = vmax.f32 %v739, 0.0
    %v745 = vpack.c.bf16 %v744, %v744
    %v746 = vld [vmem:[%s3] sm:$0xff]
    %v747 = vld [vmem:[%s3 + $0x8] sm:$0xf]
    %v748 = vld [vmem:[%s3 + $0xc] sm:$0xff]
    %v749 = vld [vmem:[%s3 + $0x14] sm:$0xf]
    %v750 = vld [vmem:[%s3 + $0x18] sm:$0xff]
    %v751 = vld [vmem:[%s3 + $0x20] sm:$0xf]
    %v752 = vld [vmem:[%s3 + $0x24] sm:$0xff]
    %v753 = vld [vmem:[%s3 + $0x2c] sm:$0xf]
    %v754 = vld [vmem:[%s3 + $0x30] sm:$0xff]
    %v755 = vld [vmem:[%s3 + $0x38] sm:$0xf]
    %v756 = vld [vmem:[%s3 + $0x3c] sm:$0xff]
    %v757 = vld [vmem:[%s3 + $0x44] sm:$0xf]
    %v758 = vld [vmem:[%s3 + $0x48] sm:$0xff]
    %v759 = vld [vmem:[%s3 + $0x50] sm:$0xf]
    %v760 = vld [vmem:[%s3 + $0x54] sm:$0xff]
    %v761 = vld [vmem:[%s3 + $0x5c] sm:$0xf]
    %v778 = vunpack.c.l.b16 %v746
    %v779 = vunpack.c.h.b16 %v746
    %v780 = vunpack.c.l.b16 %v747
    %v781 = vunpack.c.l.b16 %v748
    %v782 = vunpack.c.h.b16 %v748
    %v783 = vunpack.c.l.b16 %v749
    %v784 = vunpack.c.l.b16 %v750
    %v785 = vunpack.c.h.b16 %v750
    %v786 = vunpack.c.l.b16 %v751
    %v787 = vunpack.c.l.b16 %v752
    %v788 = vunpack.c.h.b16 %v752
    %v789 = vunpack.c.l.b16 %v753
    %v790 = vunpack.c.l.b16 %v754
    %v791 = vunpack.c.h.b16 %v754
    %v792 = vunpack.c.l.b16 %v755
    %v793 = vunpack.c.l.b16 %v756
    %v794 = vunpack.c.h.b16 %v756
    %v795 = vunpack.c.l.b16 %v757
    %v796 = vunpack.c.l.b16 %v758
    %v797 = vunpack.c.h.b16 %v758
    %v798 = vunpack.c.l.b16 %v759
    %v799 = vunpack.c.l.b16 %v760
    %v800 = vunpack.c.h.b16 %v760
    %v801 = vunpack.c.l.b16 %v761
    %v802 = vpack.c.b16 %v781, %v778
    %v803 = vpack.c.b16 %v782, %v779
    %v804 = vpack.c.b16 %v783, %v780
    %v805 = vpack.c.b16 %v787, %v784
    %v806 = vpack.c.b16 %v788, %v785
    %v807 = vpack.c.b16 %v789, %v786
    %v808 = vpack.c.b16 %v793, %v790
    %v809 = vpack.c.b16 %v794, %v791
    %v810 = vpack.c.b16 %v795, %v792
    %v811 = vpack.c.b16 %v799, %v796
    %v812 = vpack.c.b16 %v800, %v797
    %v813 = vpack.c.b16 %v801, %v798
    %vm826 = vcmask 523264
    %v828 = vsel %vm826, %v745, 0
    %830 = vmatprep.subr.bf16.mxu0 %v803
    %831 = vmatpush1.bf16.msra.mxu0 %v802
    %832 = vmatprep.subr.bf16.mxu0 %v806
    %833 = vmatpush1.bf16.msra.mxu0 %v805
    %834 = vmatprep.subr.bf16.mxu0 %v809
    %835 = vmatpush1.bf16.msra.mxu0 %v808
    %836 = vmatprep.subr.bf16.mxu0 %v812
    %837 = vmatpush1.bf16.msra.mxu0 %v811
    %838 = vmatprep.subr.bf16.mxu0 0
    %839 = vmatpush1.bf16.msra.mxu0 0
    %840 = vmatprep.subr.bf16.mxu0 0
    %841 = vmatpush1.bf16.msra.mxu0 0
    %842 = vmatprep.subr.bf16.mxu0 0
    %843 = vmatpush1.bf16.msra.mxu0 0
    %844 = vmatprep.subr.bf16.mxu0 0
    %845 = vmatpush1.bf16.msra.mxu0 0
    %846 = vmatprep.subr.bf16.mxu0 0
    %847 = vmatpush1.bf16.msra.mxu0 0
    %848 = vmatprep.subr.bf16.mxu0 0
    %849 = vmatpush1.bf16.msra.mxu0 0
    %850 = vmatprep.subr.bf16.mxu0 0
    %851 = vmatpush1.bf16.msra.mxu0 0
    %852 = vmatprep.subr.bf16.mxu0 0
    %853 = vmatpush1.bf16.msra.mxu0 0
    %854 = vmatprep.subr.bf16.mxu0 0
    %855 = vmatpush1.bf16.msra.mxu0 0
    %856 = vmatprep.subr.bf16.mxu0 0
    %857 = vmatpush1.bf16.msra.mxu0 0
    %858 = vmatprep.subr.bf16.mxu0 0
    %859 = vmatpush1.bf16.msra.mxu0 0
    %860 = vmatprep.subr.bf16.mxu0 0
    %861 = vmatpush1.bf16.msra.mxu0 0
    %862 = vmatprep.mubr.bf16.mxu0 0
    %863 = vmatmul.mubr.bf16.gmra.mrb[0].mxu0 %v828
    %v864 = vpop.f32.mrb[0].mxu0
    %v865 = vadd.f32 0.0, %v864
    %v866 = vpop.f32.mrb[0].mxu0
    %v867 = vadd.f32 0.0, %v866
    %v868 = vpop.f32.mrb[0].mxu0
    %v869 = vpop.f32.mrb[0].mxu0
    %870 = vdwg.mxu0
    %871 = vmatprep.subr.bf16.mxu0 0
    %872 = vmatpush1.bf16.msra.mxu0 %v804
    %873 = vmatprep.subr.bf16.mxu0 0
    %874 = vmatpush1.bf16.msra.mxu0 %v807
    %875 = vmatprep.subr.bf16.mxu0 0
    %876 = vmatpush1.bf16.msra.mxu0 %v810
    %877 = vmatprep.subr.bf16.mxu0 0
    %878 = vmatpush1.bf16.msra.mxu0 %v813
    %879 = vmatprep.subr.bf16.mxu0 0
    %880 = vmatpush1.bf16.msra.mxu0 0
    %881 = vmatprep.subr.bf16.mxu0 0
    %882 = vmatpush1.bf16.msra.mxu0 0
    %883 = vmatprep.subr.bf16.mxu0 0
    %884 = vmatpush1.bf16.msra.mxu0 0
    %885 = vmatprep.subr.bf16.mxu0 0
    %886 = vmatpush1.bf16.msra.mxu0 0
    %887 = vmatprep.subr.bf16.mxu0 0
    %888 = vmatpush1.bf16.msra.mxu0 0
    %889 = vmatprep.subr.bf16.mxu0 0
    %890 = vmatpush1.bf16.msra.mxu0 0
    %891 = vmatprep.subr.bf16.mxu0 0
    %892 = vmatpush1.bf16.msra.mxu0 0
    %893 = vmatprep.subr.bf16.mxu0 0
    %894 = vmatpush1.bf16.msra.mxu0 0
    %895 = vmatprep.subr.bf16.mxu0 0
    %896 = vmatpush1.bf16.msra.mxu0 0
    %897 = vmatprep.subr.bf16.mxu0 0
    %898 = vmatpush1.bf16.msra.mxu0 0
    %899 = vmatprep.subr.bf16.mxu0 0
    %900 = vmatpush1.bf16.msra.mxu0 0
    %901 = vmatprep.subr.bf16.mxu0 0
    %902 = vmatpush1.bf16.msra.mxu0 0
    %903 = vmatprep.mubr.bf16.mxu0 0
    %904 = vmatmul.mubr.bf16.gmra.mrb[0].mxu0 %v828
    %v905 = vpop.f32.mrb[0].mxu0
    %v906 = vadd.f32 0.0, %v905
    %v907 = vpop.f32.mrb[0].mxu0
    %v908 = vpop.f32.mrb[0].mxu0
    %v909 = vpop.f32.mrb[0].mxu0
    %910 = vdwg.mxu0
    %v913 = vcombine.low %v865, %v867
    %915 = vst [vmem:[#allocation2] sm:$0xff] %v913
    %916 = vst [vmem:[#allocation2 + $0x8] sm:$0xf] %v906
    // Predicated region
    $region18: #{tpu_custom_call.1} parent=1 // pred_check
      _
    $region19: #{tpu_custom_call.1} parent=1 // pred_check_branch
      %918 = sbr.rel (0) target = $region21
    $region20: #{tpu_custom_call.1} parent=1 // pred_region
      %s920 = ssub.s32 192, 192
      %921 = vsyncadd [#allocation3], %s920
      %s923 = sshll.u32 [#allocation2], 4
      %s924 = int_to_ptr.vmem [resolvable:$true] %s923
      %926 = dma.vmem_to_hbm [thread:$0]  %s924, 192, %s4, [#allocation3]
    $region21: #{tpu_custom_call.1} parent=1 // pred_fallthru
      _
    // Predicated region
    $region22: #{tpu_custom_call.1} parent=1 // pred_check
      _
    $region23: #{tpu_custom_call.1} parent=1 // pred_check_branch
      %928 = sbr.rel (0) target = $region25
    $region24: #{tpu_custom_call.1} parent=1 // pred_region
      %929 = dma.done [#allocation3], 192
    $region25: #{tpu_custom_call.1} parent=1 // pred_fallthru
      _
    %930 = vsyncpa [#allocation3], 1

</llo_original>
